<compile_context>
chip_gen: v5e
topology: v5e:2x2
jax: 0.10.0
libtpu: 0.0.40
codegen_flags: <defaults>
</compile_context>

<pallas_src>
from functools import partial

import jax
import jax.numpy as jnp
from jax.experimental import pallas as pl
from jax.experimental.pallas import tpu as pltpu

LATENT_DIM = 30
LAMBDA1 = 0.1
LAMBDA2 = 0.1


def _round_up(x, m):
    return ((x + m - 1) // m) * m


# ------- Kernel 1: row similarity  sim_rows = item_latent @ item_emb.T  ->  (B, N) -------
def _rowsim_kernel(q_ref, w_ref, o_ref):
    # Contract over the latent dim (axis 1 of both operands) on the MXU, f32 accumulation.
    o_ref[...] = jax.lax.dot_general(
        q_ref[...], w_ref[...],
        dimension_numbers=(((1,), (1,)), ((), ())),
        preferred_element_type=jnp.float32)


def similarity_rows(item_latent, item_emb, *, tile_n=512):
    """Only the B similarity rows forward() needs; grid tiles only the item (column) axis."""
    b, d = item_latent.shape
    n, _ = item_emb.shape
    b_pad = _round_up(b, 8)                     # sublane multiple
    tile_n = min(tile_n, _round_up(n, 128))     # >=128 lanes -> unmasked, lane-dense vst
    n_pad = _round_up(n, tile_n)

    # bf16 operands (half the DMA bytes, bf16 MXU path on v5e/v6e/v7x); accumulation is f32.
    q = jnp.zeros((b_pad, d), jnp.bfloat16).at[:b].set(item_latent.astype(jnp.bfloat16))
    w = jnp.zeros((n_pad, d), jnp.bfloat16).at[:n].set(item_emb.astype(jnp.bfloat16))

    out = pl.pallas_call(
        _rowsim_kernel,
        out_shape=jax.ShapeDtypeStruct((b_pad, n_pad), jnp.float32),
        grid=(n_pad // tile_n,),
        in_specs=[pl.BlockSpec((b_pad, d), lambda j: (0, 0)),    # query pinned in VMEM
                  pl.BlockSpec((tile_n, d), lambda j: (j, 0))],  # stream item_emb tiles
        out_specs=pl.BlockSpec((b_pad, tile_n), lambda j: (0, j)),
        compiler_params=pltpu.CompilerParams(
            dimension_semantics=("parallel",)),
    )(q, w)
    return out[:b, :n]


# ------- Kernel 2: residual-matrix column sums over users (tiled, pipelined reduce) -------
def _colsum_kernel(util_ref, mask_ref, ua_ref, ma_ref, o_ref):
    @pl.when(pl.program_id(1) == 0)          # first user-row block: init resident accumulator
    def _():
        o_ref[...] = jnp.zeros_like(o_ref)
    # ma already carries the global mean: resid = util - (mu + user_avg + movie_avg).
    resid = (util_ref[...] - (ua_ref[...] + ma_ref[...])) * mask_ref[...]
    o_ref[...] += jnp.sum(resid, axis=0, keepdims=True)


def residual_colsums(mu, util, mask, user_avg, movie_avg, *, tile_u=256, tile_n=512):
    """sum over users of ((util - (mu + user_avg + movie_avg)) * mask)  ->  (N,) f32."""
    u, n = util.shape
    tile_u = min(tile_u, _round_up(u, 8))
    tile_n = min(tile_n, _round_up(n, 128))
    u_pad = _round_up(u, tile_u)
    n_pad = _round_up(n, tile_n)

    # Zero padding is safe: padded entries have mask == 0, so they contribute nothing.
    util_p = jnp.zeros((u_pad, n_pad), jnp.float32).at[:u, :n].set(util)
    mask_p = jnp.zeros((u_pad, n_pad), jnp.float32).at[:u, :n].set(mask)
    ua_p = jnp.zeros((u_pad, 1), jnp.float32).at[:u, 0].set(user_avg)
    ma_p = jnp.zeros((1, n_pad), jnp.float32).at[0, :n].set(movie_avg + mu)  # fold scalar mu

    # VMEM budget per step: 2 big inputs x 2 buffers x tile_u*tile_n*4B  (<= 2 MiB here),
    # comfortably inside v7x's 32 MiB scoped / 64 MiB physical VMEM.
    out = pl.pallas_call(
        _colsum_kernel,
        out_shape=jax.ShapeDtypeStruct((1, n_pad), jnp.float32),
        grid=(n_pad // tile_n, u_pad // tile_u),   # reduction (user) axis last
        in_specs=[pl.BlockSpec((tile_u, tile_n), lambda j, i: (i, j)),
                  pl.BlockSpec((tile_u, tile_n), lambda j, i: (i, j)),
                  pl.BlockSpec((tile_u, 1), lambda j, i: (i, 0)),
                  pl.BlockSpec((1, tile_n), lambda j, i: (0, j))],
        out_specs=pl.BlockSpec((1, tile_n), lambda j, i: (0, j)),  # resident across user axis
        compiler_params=pltpu.CompilerParams(
            dimension_semantics=("parallel", "arbitrary")),
    )(util_p, mask_p, ua_p, ma_p)
    return out[0, :n]


# --------------------------------------- forward glue ---------------------------------------
def matrix_factorization_forward(params, user_indices, item_indices, util, mask, *, top_k):
    user_emb = params["user_emb"]
    item_emb = params["item_emb"]
    user_avg = params["user_avg"]
    movie_avg = params["movie_avg"]
    mu = params["global_mean"]

    user_bias = user_avg[user_indices] - mu
    item_bias = movie_avg[item_indices] - mu
    baseline = mu + user_bias + item_bias

    user_latent = user_emb[user_indices]
    item_latent = item_emb[item_indices]

    # Only the B similarity rows that are used downstream.           (Pallas, bf16 MXU)
    sim_rows = similarity_rows(item_latent, item_emb)                # (B, N) f32

    # Column sums (over users) of the masked residual matrix.        (Pallas, tiled VPU reduce)
    colsum = residual_colsums(mu, util, mask, user_avg, movie_avg)   # (N,) f32

    # TODO(synk): top-k selection has no clean Pallas TPU equivalent; done with lax.top_k.
    topk_vals, topk_idx = jax.lax.top_k(sim_rows, top_k)             # (B, K)
    topk_colsums = jnp.take(colsum, topk_idx, axis=0)                # (B, K)

    # Per-example math is tiny -> left to XLA fusion (no pallas_call launch overhead).
    svd_score = jnp.sum(user_latent * item_latent, axis=1)
    residual_contrib = jnp.sum(topk_vals * topk_colsums, axis=1)
    preds = jnp.maximum(baseline + svd_score + residual_contrib, 0.0)
    reg = LAMBDA1 * jnp.sum(user_latent ** 2) + LAMBDA2 * jnp.sum(item_latent ** 2)
    return preds, reg


if __name__ == "__main__":
    key = jax.random.PRNGKey(0)
    num_users, num_items, latent_dim = 64, 128, LATENT_DIM
    batch, top_k = 8, 16

    k1, k2, k3, k4, k5, k6 = jax.random.split(key, 6)

    # Synthetic "sparse" utility matrix (dense with an observation mask).
    mask = (jax.random.uniform(k1, (num_users, num_items)) < 0.3).astype(jnp.float32)
    util = (jnp.round(jax.random.uniform(k2, (num_users, num_items),
                                         minval=0.5, maxval=5.0) * 2.0) / 2.0) * mask

    # Deterministic "parameters" mirroring __init__ (averages from observed ratings).
    counts_u = jnp.maximum(mask.sum(axis=1), 1.0)
    counts_i = jnp.maximum(mask.sum(axis=0), 1.0)
    global_mean = util.sum() / jnp.maximum(mask.sum(), 1.0)
    user_avg = util.sum(axis=1) / counts_u
    movie_avg = util.sum(axis=0) / counts_i
    user_emb = 0.1 * jax.random.normal(k3, (num_users, latent_dim), jnp.float32)
    item_emb = 0.1 * jax.random.normal(k4, (num_items, latent_dim), jnp.float32)

    user_indices = jax.random.randint(k5, (batch,), 0, num_users)
    item_indices = jax.random.randint(k6, (batch,), 0, num_items)

    params = dict(user_emb=user_emb, item_emb=item_emb, user_avg=user_avg,
                  movie_avg=movie_avg, global_mean=global_mean)

    fwd = jax.jit(partial(matrix_factorization_forward, top_k=top_k))
    preds, reg = fwd(params, user_indices, item_indices, util, mask)
    preds = jax.block_until_ready(preds)
    reg = jax.block_until_ready(reg)

    # Pure-JAX reference (same bf16-input / f32-accumulation matmul policy as the kernel).
    sim_rows_r = jnp.dot(item_emb[item_indices].astype(jnp.bfloat16),
                         item_emb.astype(jnp.bfloat16).T,
                         preferred_element_type=jnp.float32)
    resid_r = (util - (global_mean + user_avg[:, None] + movie_avg[None, :])) * mask
    colsum_r = resid_r.sum(axis=0)
    tv, ti = jax.lax.top_k(sim_rows_r, top_k)
    rc_r = jnp.sum(tv * colsum_r[ti], axis=1)
    base_r = global_mean + (user_avg[user_indices] - global_mean) \
        + (movie_avg[item_indices] - global_mean)
    ul_r = user_emb[user_indices]
    il_r = item_emb[item_indices]
    preds_r = jnp.maximum(base_r + jnp.sum(ul_r * il_r, axis=1) + rc_r, 0.0)
    reg_r = LAMBDA1 * jnp.sum(ul_r ** 2) + LAMBDA2 * jnp.sum(il_r ** 2)

    assert preds.shape == (batch,) and reg.shape == ()
    assert jnp.allclose(preds, preds_r, atol=1e-3, rtol=1e-3)
    assert jnp.allclose(reg, reg_r, atol=1e-5, rtol=1e-5)
    print("KERNEL_OK")
</pallas_src>

<mosaic_0001>
module attributes {stable_mosaic.version = 11 : i64} {
  func.func @_rowsim_kernel(%arg0: i32, %arg1: memref<8x30xbf16, #tpu.memory_space<vmem>>, %arg2: memref<128x30xbf16, #tpu.memory_space<vmem>>, %arg3: memref<8x128xf32, #tpu.memory_space<vmem>>) attributes {dimension_semantics = [#tpu.dimension_semantics<parallel>], iteration_bounds = array<i64: 1>, scalar_prefetch = 0 : i64, scratch_operands = 0 : i64, tpu.core_type = #tpu.core_type<tc>, window_params = [{pipeline_mode = #tpu.pipeline_mode<synchronous>, transform_indices = @transform_0, window_bounds = array<i64: 8, 30>}, {transform_indices = @transform_1, window_bounds = array<i64: 128, 30>}, {transform_indices = @transform_2, window_bounds = array<i64: 8, 128>}]} {
    %c0 = arith.constant 0 : index
    %c0_0 = arith.constant 0 : index
    %0 = vector.load %arg1[%c0, %c0_0] : memref<8x30xbf16, #tpu.memory_space<vmem>>, vector<8x30xbf16>
    %c0_1 = arith.constant 0 : index
    %c0_2 = arith.constant 0 : index
    %1 = vector.load %arg2[%c0_1, %c0_2] : memref<128x30xbf16, #tpu.memory_space<vmem>>, vector<128x30xbf16>
    %cst = arith.constant dense<0.000000e+00> : vector<8x128xf32>
    %2 = tpu.matmul %0, %1, %cst {dimension_numbers = #tpu.dot_dimension_numbers<[1], [1], [0], [0], [0, 0, 1, 0], [], []>} : vector<8x30xbf16>, vector<128x30xbf16>, vector<8x128xf32> -> vector<8x128xf32>
    %c0_3 = arith.constant 0 : index
    %c0_4 = arith.constant 0 : index
    %3 = vector.load %arg3[%c0_3, %c0_4] : memref<8x128xf32, #tpu.memory_space<vmem>>, vector<8x128xf32>
    tpu.vector_store %arg3[%c0_3, %c0_4], %2 {strides = array<i32>} : memref<8x128xf32, #tpu.memory_space<vmem>>, vector<8x128xf32>,
    return
  }
  func.func @transform_0(%arg0: i32) -> (i32, i32) {
    %c0_i32 = arith.constant 0 : i32
    %c0_i32_0 = arith.constant 0 : i32
    %c0_i32_1 = arith.constant 0 : i32
    return %c0_i32, %c0_i32_0 : i32, i32
  }
  func.func @transform_1(%arg0: i32) -> (i32, i32) {
    %c0_i32 = arith.constant 0 : i32
    %c0_i32_0 = arith.constant 0 : i32
    return %arg0, %c0_i32 : i32, i32
  }
  func.func @transform_2(%arg0: i32) -> (i32, i32) {
    %c0_i32 = arith.constant 0 : i32
    %c0_i32_0 = arith.constant 0 : i32
    return %c0_i32, %arg0 : i32, i32
  }
}

module attributes {stable_mosaic.version = 11 : i64} {
  func.func @_colsum_kernel(%arg0: i32, %arg1: i32, %arg2: memref<64x128xf32, #tpu.memory_space<vmem>>, %arg3: memref<64x128xf32, #tpu.memory_space<vmem>>, %arg4: memref<64x1xf32, #tpu.memory_space<vmem>>, %arg5: memref<1x128xf32, #tpu.memory_space<vmem>>, %arg6: memref<1x128xf32, #tpu.memory_space<vmem>>) attributes {dimension_semantics = [#tpu.dimension_semantics<parallel>, #tpu.dimension_semantics<arbitrary>], iteration_bounds = array<i64: 1, 1>, scalar_prefetch = 0 : i64, scratch_operands = 0 : i64, tpu.core_type = #tpu.core_type<tc>, window_params = [{transform_indices = @transform_0, window_bounds = array<i64: 64, 128>}, {transform_indices = @transform_1, window_bounds = array<i64: 64, 128>}, {transform_indices = @transform_2, window_bounds = array<i64: 64, 1>}, {transform_indices = @transform_3, window_bounds = array<i64: 1, 128>}, {transform_indices = @transform_4, window_bounds = array<i64: 1, 128>}]} {
    %c0_i32 = arith.constant 0 : i32
    %0 = arith.cmpi eq, %arg1, %c0_i32 : i32
    %1 = arith.extui %0 : i1 to i32
    %c0_i32_0 = arith.constant 0 : i32
    %2 = arith.cmpi ne, %1, %c0_i32_0 : i32
    scf.if %2 {
      %cst_12 = arith.constant 0.000000e+00 : f32
      %17 = vector.broadcast %cst_12 : f32 to vector<1x128xf32>
      %c0_13 = arith.constant 0 : index
      %c0_14 = arith.constant 0 : index
      %18 = vector.load %arg6[%c0_13, %c0_14] : memref<1x128xf32, #tpu.memory_space<vmem>>, vector<1x128xf32>
      tpu.vector_store %arg6[%c0_13, %c0_14], %17 {strides = array<i32>} : memref<1x128xf32, #tpu.memory_space<vmem>>, vector<1x128xf32>,
    } else {
    }
    %c0 = arith.constant 0 : index
    %c0_1 = arith.constant 0 : index
    %3 = vector.load %arg2[%c0, %c0_1] : memref<64x128xf32, #tpu.memory_space<vmem>>, vector<64x128xf32>
    %c0_2 = arith.constant 0 : index
    %c0_3 = arith.constant 0 : index
    %4 = vector.load %arg4[%c0_2, %c0_3] : memref<64x1xf32, #tpu.memory_space<vmem>>, vector<64x1xf32>
    %c0_4 = arith.constant 0 : index
    %c0_5 = arith.constant 0 : index
    %5 = vector.load %arg5[%c0_4, %c0_5] : memref<1x128xf32, #tpu.memory_space<vmem>>, vector<1x128xf32>
    %6 = vector.broadcast %4 : vector<64x1xf32> to vector<64x128xf32>
    %7 = vector.broadcast %5 : vector<1x128xf32> to vector<64x128xf32>
    %8 = arith.addf %6, %7 : vector<64x128xf32>
    %9 = arith.subf %3, %8 : vector<64x128xf32>
    %c0_6 = arith.constant 0 : index
    %c0_7 = arith.constant 0 : index
    %10 = vector.load %arg3[%c0_6, %c0_7] : memref<64x128xf32, #tpu.memory_space<vmem>>, vector<64x128xf32>
    %11 = arith.mulf %9, %10 : vector<64x128xf32>
    %c0_8 = arith.constant 0 : index
    %c0_9 = arith.constant 0 : index
    %12 = vector.load %arg6[%c0_8, %c0_9] : memref<1x128xf32, #tpu.memory_space<vmem>>, vector<1x128xf32>
    %cst = arith.constant dense<0.000000e+00> : vector<128xf32>
    %13 = vector.multi_reduction <add>, %11, %cst [0] : vector<64x128xf32> to vector<128xf32>
    %14 = vector.shape_cast %13 : vector<128xf32> to vector<1x128xf32>
    %15 = arith.addf %12, %14 : vector<1x128xf32>
    %c0_10 = arith.constant 0 : index
    %c0_11 = arith.constant 0 : index
    %16 = vector.load %arg6[%c0_10, %c0_11] : memref<1x128xf32, #tpu.memory_space<vmem>>, vector<1x128xf32>
    tpu.vector_store %arg6[%c0_10, %c0_11], %15 {strides = array<i32>} : memref<1x128xf32, #tpu.memory_space<vmem>>, vector<1x128xf32>,
    return
  }
  func.func @transform_0(%arg0: i32, %arg1: i32) -> (i32, i32) {
    %c0_i32 = arith.constant 0 : i32
    return %arg1, %arg0 : i32, i32
  }
  func.func @transform_1(%arg0: i32, %arg1: i32) -> (i32, i32) {
    %c0_i32 = arith.constant 0 : i32
    return %arg1, %arg0 : i32, i32
  }
  func.func @transform_2(%arg0: i32, %arg1: i32) -> (i32, i32) {
    %c0_i32 = arith.constant 0 : i32
    %c0_i32_0 = arith.constant 0 : i32
    return %arg1, %c0_i32 : i32, i32
  }
  func.func @transform_3(%arg0: i32, %arg1: i32) -> (i32, i32) {
    %c0_i32 = arith.constant 0 : i32
    %c0_i32_0 = arith.constant 0 : i32
    return %c0_i32, %arg0 : i32, i32
  }
  func.func @transform_4(%arg0: i32, %arg1: i32) -> (i32, i32) {
    %c0_i32 = arith.constant 0 : i32
    %c0_i32_0 = arith.constant 0 : i32
    return %c0_i32, %arg0 : i32, i32
  }
}

</mosaic_0001>

<llo_original>
// kernel: matrix_factorization_forward.3
$region0: #{matrix_factorization_forward.3}
  #allocation0 [shape = 'u32[]', space=smem, size = 0x4, offset = 0x4, fixed_abs, tag = 'smem constant byte address 0x4 - core index']
  #allocation1 [shape = 'u32[72,128]{1,0:T(1,128)}', space=vmem, size = 0x9000, scoped, tag = 'internal scratch']
  %s0 = inlined_call_operand.vmem [shape: f32[64,128], index: 0, kind: input, shape index: {}]
  %s1 = inlined_call_operand.vmem [shape: f32[64,128], index: 1, kind: input, shape index: {}]
  %s2 = inlined_call_operand.vmem [shape: f32[64,1], index: 2, kind: input, shape index: {}]
  %s3 = inlined_call_operand.vmem [shape: f32[1,128], index: 3, kind: input, shape index: {}]
  %s4 = inlined_call_operand.vmem [shape: f32[1,128], index: 4, kind: output, shape index: {}]
  %s5 = sld [smem:[#allocation0]]
  $region30: #{matrix_factorization_forward.3} parent=0
    _
  %s7 = ssub.s32 1, %s5
  %s8 = scalar_select 0, %s7, %s5
  // Predicated region
  $region2: #{matrix_factorization_forward.3} parent=0 // pred_check
    _
  $region3: #{matrix_factorization_forward.3} parent=0 // pred_check_branch
    %10 = sbr.rel (0) target = $region5
  $region4: #{matrix_factorization_forward.3} parent=0 // pred_region
    _
  $region5: #{matrix_factorization_forward.3} parent=0 // pred_fallthru
    _
  // Predicated region
  $region6: #{matrix_factorization_forward.3} parent=0 // pred_check
    _
  $region7: #{matrix_factorization_forward.3} parent=0 // pred_check_branch
    %12 = sbr.rel (0) target = $region9
  $region8: #{matrix_factorization_forward.3} parent=0 // pred_region
    _
  $region9: #{matrix_factorization_forward.3} parent=0 // pred_fallthru
    _
  // Predicated region
  $region10: #{matrix_factorization_forward.3} parent=0 // pred_check
    _
  $region11: #{matrix_factorization_forward.3} parent=0 // pred_check_branch
    %14 = sbr.rel (0) target = $region13
  $region12: #{matrix_factorization_forward.3} parent=0 // pred_region
    _
  $region13: #{matrix_factorization_forward.3} parent=0 // pred_fallthru
    _
  // Predicated region
  $region14: #{matrix_factorization_forward.3} parent=0 // pred_check
    _
  $region15: #{matrix_factorization_forward.3} parent=0 // pred_check_branch
    %16 = sbr.rel (0) target = $region17
  $region16: #{matrix_factorization_forward.3} parent=0 // pred_region
    _
  $region17: #{matrix_factorization_forward.3} parent=0 // pred_fallthru
    _
  %p17 = scmp.eq.s32.totalorder 0, 0
  // Predicated region
  $region18: #{matrix_factorization_forward.3} parent=0 // pred_check
    %p18 = pneg %p17
  $region19: #{matrix_factorization_forward.3} parent=0 // pred_check_branch
    %20 = sbr.rel (%p18) target = $region21
  $region20: #{matrix_factorization_forward.3} parent=0 // pred_region
    %21 = vst [vmem:[%s4] sm:$0x1] 0.0
  $region21: #{matrix_factorization_forward.3} parent=0 // pred_fallthru
    _
  %v22 = vld [vmem:[%s0] sm:$0xff]
  %v23 = vld [vmem:[%s0 + $0x8] sm:$0xff]
  %v24 = vld [vmem:[%s0 + $0x10] sm:$0xff]
  %v25 = vld [vmem:[%s0 + $0x18] sm:$0xff]
  %v26 = vld [vmem:[%s0 + $0x20] sm:$0xff]
  %v27 = vld [vmem:[%s0 + $0x28] sm:$0xff]
  %v28 = vld [vmem:[%s0 + $0x30] sm:$0xff]
  %v29 = vld [vmem:[%s0 + $0x38] sm:$0xff]
  %v30 = vld [vmem:[%s2] sm:$0xff]
  %v31 = vld [vmem:[%s2 + $0x8] sm:$0xff]
  %v32 = vld [vmem:[%s2 + $0x10] sm:$0xff]
  %v33 = vld [vmem:[%s2 + $0x18] sm:$0xff]
  %v34 = vld [vmem:[%s2 + $0x20] sm:$0xff]
  %v35 = vld [vmem:[%s2 + $0x28] sm:$0xff]
  %v36 = vld [vmem:[%s2 + $0x30] sm:$0xff]
  %v37 = vld [vmem:[%s2 + $0x38] sm:$0xff]
  %v38 = vld [vmem:[%s3] sm:$0x1]
  %40 = vset.pattern.permute.xlu0 0
  %41 = vperm.xlu0 %40, %v30
  %v42 = vpop.permute.xlu0 %41
  %45 = vset.pattern.permute.xlu0 0
  %46 = vperm.xlu0 %45, %v31
  %v47 = vpop.permute.xlu0 %46
  %50 = vset.pattern.permute.xlu0 0
  %51 = vperm.xlu0 %50, %v32
  %v52 = vpop.permute.xlu0 %51
  %55 = vset.pattern.permute.xlu0 0
  %56 = vperm.xlu0 %55, %v33
  %v57 = vpop.permute.xlu0 %56
  %60 = vset.pattern.permute.xlu0 0
  %61 = vperm.xlu0 %60, %v34
  %v62 = vpop.permute.xlu0 %61
  %65 = vset.pattern.permute.xlu0 0
  %66 = vperm.xlu0 %65, %v35
  %v67 = vpop.permute.xlu0 %66
  %70 = vset.pattern.permute.xlu0 0
  %71 = vperm.xlu0 %70, %v36
  %v72 = vpop.permute.xlu0 %71
  %75 = vset.pattern.permute.xlu0 0
  %76 = vperm.xlu0 %75, %v37
  %v77 = vpop.permute.xlu0 %76
  %v80 = vperm.slane %v38, 0
  %v82 = vadd.f32 %v42, %v80
  %v83 = vadd.f32 %v47, %v80
  %v84 = vadd.f32 %v52, %v80
  %v85 = vadd.f32 %v57, %v80
  %v86 = vadd.f32 %v62, %v80
  %v87 = vadd.f32 %v67, %v80
  %v88 = vadd.f32 %v72, %v80
  %v89 = vadd.f32 %v77, %v80
  %v90 = vsub.f32 %v22, %v82
  %v91 = vsub.f32 %v23, %v83
  %v92 = vsub.f32 %v24, %v84
  %v93 = vsub.f32 %v25, %v85
  %v94 = vsub.f32 %v26, %v86
  %v95 = vsub.f32 %v27, %v87
  %v96 = vsub.f32 %v28, %v88
  %v97 = vsub.f32 %v29, %v89
  %v98 = vld [vmem:[%s1] sm:$0xff]
  %v99 = vld [vmem:[%s1 + $0x8] sm:$0xff]
  %v100 = vld [vmem:[%s1 + $0x10] sm:$0xff]
  %v101 = vld [vmem:[%s1 + $0x18] sm:$0xff]
  %v102 = vld [vmem:[%s1 + $0x20] sm:$0xff]
  %v103 = vld [vmem:[%s1 + $0x28] sm:$0xff]
  %v104 = vld [vmem:[%s1 + $0x30] sm:$0xff]
  %v105 = vld [vmem:[%s1 + $0x38] sm:$0xff]
  %v106 = vmul.f32 %v90, %v98
  %v107 = vmul.f32 %v91, %v99
  %v108 = vmul.f32 %v92, %v100
  %v109 = vmul.f32 %v93, %v101
  %v110 = vmul.f32 %v94, %v102
  %v111 = vmul.f32 %v95, %v103
  %v112 = vmul.f32 %v96, %v104
  %v113 = vmul.f32 %v97, %v105
  %v114 = vld [vmem:[%s4] sm:$0x1]
  %v115 = vadd.f32 %v106, %v107
  %v116 = vadd.f32 %v115, %v108
  %v117 = vadd.f32 %v116, %v109
  %v118 = vadd.f32 %v117, %v110
  %v119 = vadd.f32 %v118, %v111
  %v120 = vadd.f32 %v119, %v112
  %v121 = vadd.f32 %v120, %v113
  %v122 = vrot.slane %v121, 4
  %v123 = vadd.f32 %v121, %v122
  %v124 = vrot.slane %v123, 2
  %v125 = vadd.f32 %v123, %v124
  %v126 = vrot.slane %v125, 1
  %v127 = vadd.f32 %v125, %v126
  %v128 = vadd.f32 %v114, %v127
  %129 = vst [vmem:[%s4] sm:$0x1] %v128
  // Predicated region
  $region22: #{matrix_factorization_forward.3} parent=0 // pred_check
    _
  $region23: #{matrix_factorization_forward.3} parent=0 // pred_check_branch
    %131 = sbr.rel (0) target = $region25
  $region24: #{matrix_factorization_forward.3} parent=0 // pred_region
    _
  $region25: #{matrix_factorization_forward.3} parent=0 // pred_fallthru
    _
  // Predicated region
  $region26: #{matrix_factorization_forward.3} parent=0 // pred_check
    _
  $region27: #{matrix_factorization_forward.3} parent=0 // pred_check_branch
    %133 = sbr.rel (0) target = $region29
  $region28: #{matrix_factorization_forward.3} parent=0 // pred_region
    _
  $region29: #{matrix_factorization_forward.3} parent=0 // pred_fallthru
    _

// kernel: matrix_factorization_forward.2
$region0: #{matrix_factorization_forward.2}
  #allocation0 [shape = 'u32[]', space=smem, size = 0x4, offset = 0x4, fixed_abs, tag = 'smem constant byte address 0x4 - core index']
  #allocation1 [shape = 'u32[72,128]{1,0:T(1,128)}', space=vmem, size = 0x9000, scoped, tag = 'internal scratch']
  %s0 = inlined_call_operand.vmem [shape: bf16[8,30], index: 0, kind: input, shape index: {}]
  %s1 = inlined_call_operand.vmem [shape: bf16[128,30], index: 1, kind: input, shape index: {}]
  %s2 = inlined_call_operand.vmem [shape: f32[8,128], index: 2, kind: output, shape index: {}]
  %s3 = sld [smem:[#allocation0]]
  $region18: #{matrix_factorization_forward.2} parent=0
    _
  %s5 = ssub.s32 1, %s3
  %s6 = scalar_select 0, %s5, %s3
  // Predicated region
  $region2: #{matrix_factorization_forward.2} parent=0 // pred_check
    _
  $region3: #{matrix_factorization_forward.2} parent=0 // pred_check_branch
    %8 = sbr.rel (0) target = $region5
  $region4: #{matrix_factorization_forward.2} parent=0 // pred_region
    _
  $region5: #{matrix_factorization_forward.2} parent=0 // pred_fallthru
    _
  // Predicated region
  $region6: #{matrix_factorization_forward.2} parent=0 // pred_check
    _
  $region7: #{matrix_factorization_forward.2} parent=0 // pred_check_branch
    %10 = sbr.rel (0) target = $region9
  $region8: #{matrix_factorization_forward.2} parent=0 // pred_region
    _
  $region9: #{matrix_factorization_forward.2} parent=0 // pred_fallthru
    _
  %v11 = vld [vmem:[%s0] sm:$0xf]
  %v12 = vld [vmem:[%s1] sm:$0xf]
  %v13 = vld [vmem:[%s1 + $0x4] sm:$0xf]
  %v14 = vld [vmem:[%s1 + $0x8] sm:$0xf]
  %v15 = vld [vmem:[%s1 + $0xc] sm:$0xf]
  %v16 = vld [vmem:[%s1 + $0x10] sm:$0xf]
  %v17 = vld [vmem:[%s1 + $0x14] sm:$0xf]
  %v18 = vld [vmem:[%s1 + $0x18] sm:$0xf]
  %v19 = vld [vmem:[%s1 + $0x1c] sm:$0xf]
  %v20 = vld [vmem:[%s1 + $0x20] sm:$0xf]
  %v21 = vld [vmem:[%s1 + $0x24] sm:$0xf]
  %v22 = vld [vmem:[%s1 + $0x28] sm:$0xf]
  %v23 = vld [vmem:[%s1 + $0x2c] sm:$0xf]
  %v24 = vld [vmem:[%s1 + $0x30] sm:$0xf]
  %v25 = vld [vmem:[%s1 + $0x34] sm:$0xf]
  %v26 = vld [vmem:[%s1 + $0x38] sm:$0xf]
  %v27 = vld [vmem:[%s1 + $0x3c] sm:$0xf]
  %v44 = vunpack.c.l.b16 %v12
  %v45 = vunpack.c.l.b16 %v13
  %v46 = vunpack.c.l.b16 %v14
  %v47 = vunpack.c.l.b16 %v15
  %v48 = vunpack.c.l.b16 %v16
  %v49 = vunpack.c.l.b16 %v17
  %v50 = vunpack.c.l.b16 %v18
  %v51 = vunpack.c.l.b16 %v19
  %v52 = vunpack.c.l.b16 %v20
  %v53 = vunpack.c.l.b16 %v21
  %v54 = vunpack.c.l.b16 %v22
  %v55 = vunpack.c.l.b16 %v23
  %v56 = vunpack.c.l.b16 %v24
  %v57 = vunpack.c.l.b16 %v25
  %v58 = vunpack.c.l.b16 %v26
  %v59 = vunpack.c.l.b16 %v27
  %v60 = vpack.c.b16 %v45, %v44
  %v61 = vpack.c.b16 %v47, %v46
  %v62 = vpack.c.b16 %v49, %v48
  %v63 = vpack.c.b16 %v51, %v50
  %v64 = vpack.c.b16 %v53, %v52
  %v65 = vpack.c.b16 %v55, %v54
  %v66 = vpack.c.b16 %v57, %v56
  %v67 = vpack.c.b16 %v59, %v58
  %vm68 = vcmask 244736
  %v70 = vsel %vm68, %v11, 0
  %v73 = vsel %vm68, %v60, 0
  %v76 = vsel %vm68, %v61, 0
  %v79 = vsel %vm68, %v62, 0
  %v82 = vsel %vm68, %v63, 0
  %v85 = vsel %vm68, %v64, 0
  %v88 = vsel %vm68, %v65, 0
  %v91 = vsel %vm68, %v66, 0
  %v94 = vsel %vm68, %v67, 0
  %96 = vmatpush.bf16.xpose.msra.mxu0 %v94
  %97 = vmatpush.bf16.xpose.msra.mxu0 %v91
  %98 = vmatpush.bf16.xpose.msra.mxu0 %v88
  %99 = vmatpush.bf16.xpose.msra.mxu0 %v85
  %100 = vmatpush.bf16.xpose.msra.mxu0 %v82
  %101 = vmatpush.bf16.xpose.msra.mxu0 %v79
  %102 = vmatpush.bf16.xpose.msra.mxu0 %v76
  %103 = vmatpush.bf16.xpose.msra.mxu0 %v73
  %104 = vmatmul.bf16.gmra.mxu0 %v70
  %v105 = vpop.f32.mrf.mxu0
  %v106 = vadd.f32 0.0, %v105
  %v107 = vpop.f32.mrf.mxu0
  %108 = vdwg.mxu0
  %109 = vst [vmem:[%s2] sm:$0xff] %v106
  // Predicated region
  $region10: #{matrix_factorization_forward.2} parent=0 // pred_check
    _
  $region11: #{matrix_factorization_forward.2} parent=0 // pred_check_branch
    %111 = sbr.rel (0) target = $region13
  $region12: #{matrix_factorization_forward.2} parent=0 // pred_region
    _
  $region13: #{matrix_factorization_forward.2} parent=0 // pred_fallthru
    _
  // Predicated region
  $region14: #{matrix_factorization_forward.2} parent=0 // pred_check
    _
  $region15: #{matrix_factorization_forward.2} parent=0 // pred_check_branch
    %113 = sbr.rel (0) target = $region17
  $region16: #{matrix_factorization_forward.2} parent=0 // pred_region
    _
  $region17: #{matrix_factorization_forward.2} parent=0 // pred_fallthru
    _

</llo_original>
